<compile_context>
chip_gen: v7x
topology: tpu7x:2x2x1
jax: 0.10.0
libtpu: 0.0.40
codegen_flags: <defaults>
</compile_context>

<pallas_src>
import functools

import numpy as np
import jax
import jax.numpy as jnp
from jax.experimental import pallas as pl
from jax.experimental.pallas import tpu as pltpu

_EPS = 1e-8
_LANE = 128
# Unified VMEM estimate: 2x input + 2x output pipeline buffers (f32 tiles of
# shape [B, block_d]) plus ~6 live kernel temporaries of the same shape.
_LIVE_TILE_ESTIMATE = 10


def _fused_contrastive_kernel(x_ref, pmask_ref, nmask_ref, out_ref, *, eps):
    """Fused masked pairwise-cosine (dim=1 semantics), single combined output.

    x_ref:     [B, Td]  column tile of the (padded) prediction matrix
    pmask_ref: [B, 1]   1.0 where label == 1
    nmask_ref: [B, 1]   1.0 where label == 0
    out_ref:   [B, Td]  row i = exp(S_pos[i]) if label[i]==1 else S_neg[i]
                        (rows with labels outside {0,1} hold unused finite data)
    """
    x = x_ref[...].astype(jnp.float32)            # [B, Td]
    pm = pmask_ref[...].astype(jnp.float32)       # [B, 1]
    nm = nmask_ref[...].astype(jnp.float32)       # [B, 1]
    is_pos = pm > 0.5                             # [B, 1] row selector

    eps_f = jnp.float32(eps)
    inv_eps = jnp.float32(1.0 / eps)
    big = jnp.float32(1e30)
    tiny = jnp.float32(1e-30)

    abs_x = jnp.abs(x)
    x_nonneg = x >= 0.0                           # sign(x) select mask

    # ---------------- per-column masked statistics (products reused) --------
    px = pm * x                                   # [B, Td]
    nx = nm * x
    colsum_p = jnp.sum(px, axis=0, keepdims=True)                   # [1, Td]
    colsum_n = jnp.sum(nx, axis=0, keepdims=True)
    cnorm_p = jnp.sqrt(jnp.sum(px * x, axis=0, keepdims=True))      # pm∈{0,1}
    cnorm_n = jnp.sqrt(jnp.sum(nx * x, axis=0, keepdims=True))
    sqcnt_p = jnp.sqrt(jnp.sum(pm, axis=0, keepdims=True))          # [1, 1]
    sqcnt_n = jnp.sqrt(jnp.sum(nm, axis=0, keepdims=True))
    denc_p = sqcnt_p * cnorm_p                                      # [1, Td]
    denc_n = sqcnt_n * cnorm_n
    # NOTE: the tiny floor is absent in the reference.  It can only act when
    # every in-subset element of that column is already eps-clamped (colnorm
    # bounds |x|), i.e. when r is unused; it exists solely to keep NaN/Inf out
    # of the fast path.  Do not remove this invariant in future refactors.
    r_p = colsum_p / jnp.maximum(denc_p, tiny)                      # [1, Td]
    r_n = colsum_n / jnp.maximum(denc_n, tiny)

    # ---------------- fast path --------------------------------------------
    # Exact whenever no in-subset element hits the eps clamp:
    #   S = sign(x) * r,  exp applied per column (EUP work O(Td), not O(B*Td)).
    pos_fast = jnp.where(x_nonneg, jnp.exp(r_p), jnp.exp(-r_p))     # [B, Td]
    neg_fast = jnp.where(x_nonneg, r_n, -r_n)
    out_ref[...] = jnp.where(is_pos, pos_fast, neg_fast).astype(out_ref.dtype)

    # ---------------- rescue trigger, masked per-row to each subset ---------
    # Per-column min of |x| over the rows of each subset; a clamp happens iff
    # min_in_subset(|x|) * denc < eps for some column.  x == 0 inside a subset
    # row always fires this (den == 0), which the exact path below requires.
    minabs_p = jnp.min(abs_x + (1.0 - pm) * big, axis=0, keepdims=True)  # [1,Td]
    minabs_n = jnp.min(abs_x + (1.0 - nm) * big, axis=0, keepdims=True)
    need_p = jnp.min(minabs_p * denc_p) < eps_f
    need_n = jnp.min(minabs_n * denc_n) < eps_f

    # Exact eps-clamped rescue (rare): preserves reference semantics whenever
    # sqrt(P) * |x| * colnorm < eps for any element of the relevant subset.
    @pl.when(jnp.logical_or(need_p, need_n))
    def _():
        den_p = abs_x * denc_p                    # [B, Td]
        den_n = abs_x * denc_n
        s_p = jnp.where(den_p < eps_f, (x * colsum_p) * inv_eps,
                        jnp.where(x_nonneg, r_p, -r_p))
        s_n = jnp.where(den_n < eps_f, (x * colsum_n) * inv_eps,
                        jnp.where(x_nonneg, r_n, -r_n))
        out_ref[...] = jnp.where(is_pos, jnp.exp(s_p), s_n).astype(out_ref.dtype)


def _round_up(v, m):
    return ((v + m - 1) // m) * m


def _vmem_budget_bytes():
    """Generation-aware VMEM budget (also used verbatim as vmem_limit_bytes)."""
    vmem_cap = 128 << 20
    try:
        info = pltpu.get_tpu_info()
        vmem_cap = int(getattr(info, "vmem_capacity_bytes", vmem_cap))
    except Exception:
        pass
    if vmem_cap <= (64 << 20):     # v7x-class: 64 MiB per TensorCore
        return 28 << 20
    return 40 << 20                # v5e / v6e: 128 MiB VMEM


def _choose_block_d(batch, d_lane, budget_bytes):
    """Largest lane-multiple column tile whose _LIVE_TILE_ESTIMATE f32 copies
    fit the generation-aware budget (grid-step overhead amortization)."""
    per_col_bytes = _LIVE_TILE_ESTIMATE * 4 * max(batch, 1)
    cap = max(_LANE, (budget_bytes // per_col_bytes) // _LANE * _LANE)
    block_d = min(d_lane, cap)
    return max(_LANE, (block_d // _LANE) * _LANE)


def fused_contrastive_similarity(prediction, pos_mask, neg_mask, *, eps=_EPS):
    """One fused, jit-compatible Pallas call producing the combined map.

    Returns combined [B, D] f32: row i = exp(pos-subset cosine) if pos_mask[i],
    neg-subset cosine if neg_mask[i], unused (finite) otherwise.
    The explicit neg mask is kept (tiny [B,1] stream) so labels outside {0,1}
    keep exact reference semantics for the label==0 subset.
    """
    b, d = prediction.shape
    d_lane = _round_up(max(d, 1), _LANE)
    budget = _vmem_budget_bytes()
    block_d = _choose_block_d(b, d_lane, budget)
    d_pad = _round_up(d_lane, block_d)
    grid = (d_pad // block_d,)

    x = prediction
    if d_pad != d:
        # Pad columns with 1.0: padded columns stay off the eps-clamp path and
        # produce benign finite values that are sliced away below.
        pad = jnp.ones((b, d_pad - d), dtype=prediction.dtype)
        x = jnp.concatenate([prediction, pad], axis=1)

    pm = pos_mask.reshape(b, 1).astype(jnp.float32)
    nm = neg_mask.reshape(b, 1).astype(jnp.float32)

    kern = functools.partial(_fused_contrastive_kernel, eps=eps)
    # Output kept f32; switch out_shape dtype to bf16 if the consumer tolerates
    # it (halves write traffic on this bandwidth-bound kernel).
    combined = pl.pallas_call(
        kern,
        out_shape=jax.ShapeDtypeStruct((b, d_pad), jnp.float32),
        grid=grid,
        in_specs=[
            pl.BlockSpec((b, block_d), lambda j: (0, j)),
            pl.BlockSpec((b, 1), lambda j: (0, 0)),
            pl.BlockSpec((b, 1), lambda j: (0, 0)),
        ],
        out_specs=pl.BlockSpec((b, block_d), lambda j: (0, j)),
        compiler_params=pltpu.CompilerParams(
            dimension_semantics=("parallel",),
            vmem_limit_bytes=int(budget),
        ),
    )(x, pm, nm)

    return combined[:, :d]


def molecular_wise_contrastive_loss_forward(prediction, label, *, eps=_EPS):
    """JAX/Pallas equivalent of molecular_wise_contrastive_loss.forward.

    Returns (combined [B, D], pos_mask [B], neg_mask [B]) where
      combined[i] = exp(cosine-dim1 over the pos subset)  if label[i] == 1
      combined[i] = cosine-dim1 over the neg subset       if label[i] == 0
    Consumers index rows lazily via the masks — no extra HBM gather pass and
    no host sync on the hot path.  Use `gather_reference_subsets` only when the
    reference's data-dependent [P, D] / [N, D] shapes are required.
    """
    pos_mask = (label == 1)
    neg_mask = (label == 0)
    combined = fused_contrastive_similarity(prediction, pos_mask, neg_mask, eps=eps)
    # TODO(synk): the reference `return loss` uses an undefined variable (and
    # the preceding 3-way unpack of a 2-D tensor would raise); return the
    # computed intermediates instead.
    return combined, pos_mask, neg_mask


def gather_reference_subsets(combined, label):
    """Recover the reference's [P, D] exp_pos_sim and [N, D] net_sim.

    TODO(synk): data-dependent output shapes require a host-side nonzero
    (dynamic shapes, not jit-compatible); keep this off the hot path.
    """
    label_np = np.asarray(label)
    pos_idx = jnp.asarray(np.nonzero(label_np == 1)[0], dtype=jnp.int32)
    neg_idx = jnp.asarray(np.nonzero(label_np == 0)[0], dtype=jnp.int32)
    exp_pos_sim = jnp.take(combined, pos_idx, axis=0)
    net_sim = jnp.take(combined, neg_idx, axis=0)
    return exp_pos_sim, net_sim


if __name__ == "__main__":
    key = jax.random.PRNGKey(0)
    B, D = 8, 32
    prediction = jax.random.normal(key, (B, D), dtype=jnp.float32)
    label = jnp.array([1, 0, 1, 1, 0, 0, 1, 0], dtype=jnp.int32)

    combined, pos_mask, neg_mask = molecular_wise_contrastive_loss_forward(
        prediction, label)
    jax.block_until_ready(combined)

    # Pure-JAX reference of the same math on the gathered subsets.
    def ref_cos_dim1(xs, apply_exp, eps=_EPS):
        xs = xs.astype(jnp.float32)
        p = xs.shape[0]
        colsum = jnp.sum(xs, axis=0, keepdims=True)
        colnorm = jnp.sqrt(jnp.sum(xs * xs, axis=0, keepdims=True))
        s = (xs * colsum) / jnp.maximum(
            jnp.sqrt(jnp.float32(p)) * jnp.abs(xs) * colnorm, eps)
        return jnp.exp(s) if apply_exp else s

    label_np = np.asarray(label)
    pos_idx_np = np.nonzero(label_np == 1)[0]
    neg_idx_np = np.nonzero(label_np == 0)[0]

    exp_pos_sim, net_sim = gather_reference_subsets(combined, label)
    pos_pred = prediction[jnp.asarray(pos_idx_np)]
    neg_pred = prediction[jnp.asarray(neg_idx_np)]
    np.testing.assert_allclose(
        np.asarray(exp_pos_sim), np.asarray(ref_cos_dim1(pos_pred, True)),
        rtol=1e-5, atol=1e-5)
    np.testing.assert_allclose(
        np.asarray(net_sim), np.asarray(ref_cos_dim1(neg_pred, False)),
        rtol=1e-5, atol=1e-5)

    # Exercise the eps-clamp rescue path with exact zeros inside subset rows
    # (row 0 is a pos row, row 1 is a neg row).
    pred_z = prediction.at[0, 3].set(0.0).at[1, 5].set(0.0)
    combined_z, _, _ = molecular_wise_contrastive_loss_forward(pred_z, label)
    exp_pos_z, net_z = gather_reference_subsets(combined_z, label)
    pos_z = pred_z[jnp.asarray(pos_idx_np)]
    neg_z = pred_z[jnp.asarray(neg_idx_np)]
    np.testing.assert_allclose(
        np.asarray(exp_pos_z), np.asarray(ref_cos_dim1(pos_z, True)),
        rtol=1e-5, atol=1e-5)
    np.testing.assert_allclose(
        np.asarray(net_z), np.asarray(ref_cos_dim1(neg_z, False)),
        rtol=1e-5, atol=1e-5)

    # The fused core is jit-compatible (single pallas_call, no host sync).
    jit_core = jax.jit(fused_contrastive_similarity)
    combined_jit = jit_core(prediction, label == 1, label == 0)
    jax.block_until_ready(combined_jit)
    np.testing.assert_allclose(np.asarray(combined_jit), np.asarray(combined),
                               rtol=1e-6, atol=1e-6)

    print("KERNEL_OK")
</pallas_src>

<mosaic_0001>
module attributes {stable_mosaic.version = 11 : i64} {
  func.func @_fused_contrastive_kernel(%arg0: i32, %arg1: memref<8x128xf32, #tpu.memory_space<vmem>>, %arg2: memref<8x1xf32, #tpu.memory_space<vmem>>, %arg3: memref<8x1xf32, #tpu.memory_space<vmem>>, %arg4: memref<8x128xf32, #tpu.memory_space<vmem>>) attributes {dimension_semantics = [#tpu.dimension_semantics<parallel>], iteration_bounds = array<i64: 1>, scalar_prefetch = 0 : i64, scratch_operands = 0 : i64, tpu.core_type = #tpu.core_type<tc>, window_params = [{transform_indices = @transform_0, window_bounds = array<i64: 8, 128>}, {pipeline_mode = #tpu.pipeline_mode<synchronous>, transform_indices = @transform_1, window_bounds = array<i64: 8, 1>}, {pipeline_mode = #tpu.pipeline_mode<synchronous>, transform_indices = @transform_2, window_bounds = array<i64: 8, 1>}, {transform_indices = @transform_3, window_bounds = array<i64: 8, 128>}]} {
    %c0 = arith.constant 0 : index
    %c0_0 = arith.constant 0 : index
    %0 = vector.load %arg1[%c0, %c0_0] : memref<8x128xf32, #tpu.memory_space<vmem>>, vector<8x128xf32>
    %c0_1 = arith.constant 0 : index
    %c0_2 = arith.constant 0 : index
    %1 = vector.load %arg2[%c0_1, %c0_2] : memref<8x1xf32, #tpu.memory_space<vmem>>, vector<8x1xf32>
    %c0_3 = arith.constant 0 : index
    %c0_4 = arith.constant 0 : index
    %2 = vector.load %arg3[%c0_3, %c0_4] : memref<8x1xf32, #tpu.memory_space<vmem>>, vector<8x1xf32>
    %cst = arith.constant 5.000000e-01 : f32
    %3 = vector.broadcast %cst : f32 to vector<8x1xf32>
    %4 = arith.cmpf ogt, %1, %3 : vector<8x1xf32>
    %5 = math.absf %0 : vector<8x128xf32>
    %cst_5 = arith.constant 0.000000e+00 : f32
    %6 = vector.broadcast %cst_5 : f32 to vector<8x128xf32>
    %7 = arith.cmpf oge, %0, %6 : vector<8x128xf32>
    %8 = vector.broadcast %1 : vector<8x1xf32> to vector<8x128xf32>
    %9 = arith.mulf %8, %0 : vector<8x128xf32>
    %10 = vector.broadcast %2 : vector<8x1xf32> to vector<8x128xf32>
    %11 = arith.mulf %10, %0 : vector<8x128xf32>
    %cst_6 = arith.constant dense<0.000000e+00> : vector<128xf32>
    %12 = vector.multi_reduction <add>, %9, %cst_6 [0] : vector<8x128xf32> to vector<128xf32>
    %13 = vector.shape_cast %12 : vector<128xf32> to vector<1x128xf32>
    %cst_7 = arith.constant dense<0.000000e+00> : vector<128xf32>
    %14 = vector.multi_reduction <add>, %11, %cst_7 [0] : vector<8x128xf32> to vector<128xf32>
    %15 = vector.shape_cast %14 : vector<128xf32> to vector<1x128xf32>
    %16 = arith.mulf %9, %0 : vector<8x128xf32>
    %cst_8 = arith.constant dense<0.000000e+00> : vector<128xf32>
    %17 = vector.multi_reduction <add>, %16, %cst_8 [0] : vector<8x128xf32> to vector<128xf32>
    %18 = vector.shape_cast %17 : vector<128xf32> to vector<1x128xf32>
    %19 = math.sqrt %18 : vector<1x128xf32>
    %20 = arith.mulf %11, %0 : vector<8x128xf32>
    %cst_9 = arith.constant dense<0.000000e+00> : vector<128xf32>
    %21 = vector.multi_reduction <add>, %20, %cst_9 [0] : vector<8x128xf32> to vector<128xf32>
    %22 = vector.shape_cast %21 : vector<128xf32> to vector<1x128xf32>
    %23 = math.sqrt %22 : vector<1x128xf32>
    %cst_10 = arith.constant dense<0.000000e+00> : vector<1xf32>
    %24 = vector.multi_reduction <add>, %1, %cst_10 [0] : vector<8x1xf32> to vector<1xf32>
    %25 = vector.shape_cast %24 : vector<1xf32> to vector<1x1xf32>
    %26 = math.sqrt %25 : vector<1x1xf32>
    %cst_11 = arith.constant dense<0.000000e+00> : vector<1xf32>
    %27 = vector.multi_reduction <add>, %2, %cst_11 [0] : vector<8x1xf32> to vector<1xf32>
    %28 = vector.shape_cast %27 : vector<1xf32> to vector<1x1xf32>
    %29 = math.sqrt %28 : vector<1x1xf32>
    %30 = vector.broadcast %26 : vector<1x1xf32> to vector<1x128xf32>
    %31 = arith.mulf %30, %19 : vector<1x128xf32>
    %32 = vector.broadcast %29 : vector<1x1xf32> to vector<1x128xf32>
    %33 = arith.mulf %32, %23 : vector<1x128xf32>
    %cst_12 = arith.constant 1.000000e-30 : f32
    %34 = vector.broadcast %cst_12 : f32 to vector<1x128xf32>
    %35 = arith.maximumf %31, %34 : vector<1x128xf32>
    %36 = arith.divf %13, %35 : vector<1x128xf32>
    %cst_13 = arith.constant 1.000000e-30 : f32
    %37 = vector.broadcast %cst_13 : f32 to vector<1x128xf32>
    %38 = arith.maximumf %33, %37 : vector<1x128xf32>
    %39 = arith.divf %15, %38 : vector<1x128xf32>
    %40 = math.exp %36 : vector<1x128xf32>
    %cst_14 = arith.constant 0.000000e+00 : f32
    %41 = vector.broadcast %cst_14 : f32 to vector<1x128xf32>
    %42 = arith.subf %41, %36 : vector<1x128xf32>
    %43 = math.exp %42 : vector<1x128xf32>
    %44 = vector.shape_cast %40 : vector<1x128xf32> to vector<1x128xf32>
    %45 = vector.broadcast %44 : vector<1x128xf32> to vector<8x128xf32>
    %46 = vector.shape_cast %43 : vector<1x128xf32> to vector<1x128xf32>
    %47 = vector.broadcast %46 : vector<1x128xf32> to vector<8x128xf32>
    %48 = arith.select %7, %45, %47 : vector<8x128xi1>, vector<8x128xf32>
    %cst_15 = arith.constant 0.000000e+00 : f32
    %49 = vector.broadcast %cst_15 : f32 to vector<1x128xf32>
    %50 = arith.subf %49, %39 : vector<1x128xf32>
    %51 = vector.shape_cast %39 : vector<1x128xf32> to vector<1x128xf32>
    %52 = vector.broadcast %51 : vector<1x128xf32> to vector<8x128xf32>
    %53 = vector.shape_cast %50 : vector<1x128xf32> to vector<1x128xf32>
    %54 = vector.broadcast %53 : vector<1x128xf32> to vector<8x128xf32>
    %55 = arith.select %7, %52, %54 : vector<8x128xi1>, vector<8x128xf32>
    %56 = vector.shape_cast %4 : vector<8x1xi1> to vector<8x1xi1>
    %57 = vector.broadcast %56 : vector<8x1xi1> to vector<8x128xi1>
    %58 = arith.select %57, %48, %55 : vector<8x128xi1>, vector<8x128xf32>
    %c0_16 = arith.constant 0 : index
    %c0_17 = arith.constant 0 : index
    %59 = vector.load %arg4[%c0_16, %c0_17] : memref<8x128xf32, #tpu.memory_space<vmem>>, vector<8x128xf32>
    tpu.vector_store %arg4[%c0_16, %c0_17], %58 {strides = array<i32>} : memref<8x128xf32, #tpu.memory_space<vmem>>, vector<8x128xf32>,
    %cst_18 = arith.constant 1.000000e+00 : f32
    %60 = vector.broadcast %cst_18 : f32 to vector<8x1xf32>
    %61 = arith.subf %60, %1 : vector<8x1xf32>
    %cst_19 = arith.constant 1.000000e+30 : f32
    %62 = vector.broadcast %cst_19 : f32 to vector<8x1xf32>
    %63 = arith.mulf %61, %62 : vector<8x1xf32>
    %64 = vector.broadcast %63 : vector<8x1xf32> to vector<8x128xf32>
    %65 = arith.addf %5, %64 : vector<8x128xf32>
    %cst_20 = arith.constant dense<0x7F800000> : vector<128xf32>
    %66 = vector.multi_reduction <minimumf>, %65, %cst_20 [0] : vector<8x128xf32> to vector<128xf32>
    %67 = vector.shape_cast %66 : vector<128xf32> to vector<1x128xf32>
    %cst_21 = arith.constant 1.000000e+00 : f32
    %68 = vector.broadcast %cst_21 : f32 to vector<8x1xf32>
    %69 = arith.subf %68, %2 : vector<8x1xf32>
    %cst_22 = arith.constant 1.000000e+30 : f32
    %70 = vector.broadcast %cst_22 : f32 to vector<8x1xf32>
    %71 = arith.mulf %69, %70 : vector<8x1xf32>
    %72 = vector.broadcast %71 : vector<8x1xf32> to vector<8x128xf32>
    %73 = arith.addf %5, %72 : vector<8x128xf32>
    %cst_23 = arith.constant dense<0x7F800000> : vector<128xf32>
    %74 = vector.multi_reduction <minimumf>, %73, %cst_23 [0] : vector<8x128xf32> to vector<128xf32>
    %75 = vector.shape_cast %74 : vector<128xf32> to vector<1x128xf32>
    %76 = arith.mulf %67, %31 : vector<1x128xf32>
    %77 = vector.shape_cast %76 : vector<1x128xf32> to vector<1x1x128xf32>
    %cst_24 = arith.constant dense<0x7F800000> : vector<1xf32>
    %78 = vector.multi_reduction <minimumf>, %77, %cst_24 [1, 2] : vector<1x1x128xf32> to vector<1xf32>
    %79 = vector.shape_cast %78 : vector<1xf32> to vector<1x1x1xf32>
    %80 = vector.extract %79[0, 0, 0] : f32 from vector<1x1x1xf32>
    %cst_25 = arith.constant 9.99999993E-9 : f32
    %81 = arith.cmpf olt, %80, %cst_25 : f32
    %82 = arith.mulf %75, %33 : vector<1x128xf32>
    %83 = vector.shape_cast %82 : vector<1x128xf32> to vector<1x1x128xf32>
    %cst_26 = arith.constant dense<0x7F800000> : vector<1xf32>
    %84 = vector.multi_reduction <minimumf>, %83, %cst_26 [1, 2] : vector<1x1x128xf32> to vector<1xf32>
    %85 = vector.shape_cast %84 : vector<1xf32> to vector<1x1x1xf32>
    %86 = vector.extract %85[0, 0, 0] : f32 from vector<1x1x1xf32>
    %cst_27 = arith.constant 9.99999993E-9 : f32
    %87 = arith.cmpf olt, %86, %cst_27 : f32
    %88 = arith.ori %81, %87 : i1
    %89 = arith.extui %88 : i1 to i32
    %cst_28 = arith.constant 9.99999993E-9 : f32
    %cst_29 = arith.constant 1.000000e+08 : f32
    %c0_i32 = arith.constant 0 : i32
    %90 = arith.cmpi ne, %89, %c0_i32 : i32
    scf.if %90 {
      %91 = vector.broadcast %31 : vector<1x128xf32> to vector<8x128xf32>
      %92 = arith.mulf %5, %91 : vector<8x128xf32>
      %93 = vector.broadcast %33 : vector<1x128xf32> to vector<8x128xf32>
      %94 = arith.mulf %5, %93 : vector<8x128xf32>
      %95 = vector.broadcast %cst_28 : f32 to vector<8x128xf32>
      %96 = arith.cmpf olt, %92, %95 : vector<8x128xf32>
      %97 = vector.broadcast %13 : vector<1x128xf32> to vector<8x128xf32>
      %98 = arith.mulf %0, %97 : vector<8x128xf32>
      %99 = vector.broadcast %cst_29 : f32 to vector<8x128xf32>
      %100 = arith.mulf %98, %99 : vector<8x128xf32>
      %cst_30 = arith.constant 0.000000e+00 : f32
      %101 = vector.broadcast %cst_30 : f32 to vector<1x128xf32>
      %102 = arith.subf %101, %36 : vector<1x128xf32>
      %103 = vector.shape_cast %36 : vector<1x128xf32> to vector<1x128xf32>
      %104 = vector.broadcast %103 : vector<1x128xf32> to vector<8x128xf32>
      %105 = vector.shape_cast %102 : vector<1x128xf32> to vector<1x128xf32>
      %106 = vector.broadcast %105 : vector<1x128xf32> to vector<8x128xf32>
      %107 = arith.select %7, %104, %106 : vector<8x128xi1>, vector<8x128xf32>
      %108 = arith.select %96, %100, %107 : vector<8x128xi1>, vector<8x128xf32>
      %109 = vector.broadcast %cst_28 : f32 to vector<8x128xf32>
      %110 = arith.cmpf olt, %94, %109 : vector<8x128xf32>
      %111 = vector.broadcast %15 : vector<1x128xf32> to vector<8x128xf32>
      %112 = arith.mulf %0, %111 : vector<8x128xf32>
      %113 = vector.broadcast %cst_29 : f32 to vector<8x128xf32>
      %114 = arith.mulf %112, %113 : vector<8x128xf32>
      %cst_31 = arith.constant 0.000000e+00 : f32
      %115 = vector.broadcast %cst_31 : f32 to vector<1x128xf32>
      %116 = arith.subf %115, %39 : vector<1x128xf32>
      %117 = vector.shape_cast %39 : vector<1x128xf32> to vector<1x128xf32>
      %118 = vector.broadcast %117 : vector<1x128xf32> to vector<8x128xf32>
      %119 = vector.shape_cast %116 : vector<1x128xf32> to vector<1x128xf32>
      %120 = vector.broadcast %119 : vector<1x128xf32> to vector<8x128xf32>
      %121 = arith.select %7, %118, %120 : vector<8x128xi1>, vector<8x128xf32>
      %122 = arith.select %110, %114, %121 : vector<8x128xi1>, vector<8x128xf32>
      %123 = math.exp %108 : vector<8x128xf32>
      %124 = vector.shape_cast %4 : vector<8x1xi1> to vector<8x1xi1>
      %125 = vector.broadcast %124 : vector<8x1xi1> to vector<8x128xi1>
      %126 = arith.select %125, %123, %122 : vector<8x128xi1>, vector<8x128xf32>
      %c0_32 = arith.constant 0 : index
      %c0_33 = arith.constant 0 : index
      %127 = vector.load %arg4[%c0_32, %c0_33] : memref<8x128xf32, #tpu.memory_space<vmem>>, vector<8x128xf32>
      tpu.vector_store %arg4[%c0_32, %c0_33], %126 {strides = array<i32>} : memref<8x128xf32, #tpu.memory_space<vmem>>, vector<8x128xf32>,
    } else {
    }
    return
  }
  func.func @transform_0(%arg0: i32) -> (i32, i32) {
    %c0_i32 = arith.constant 0 : i32
    %c0_i32_0 = arith.constant 0 : i32
    return %c0_i32, %arg0 : i32, i32
  }
  func.func @transform_1(%arg0: i32) -> (i32, i32) {
    %c0_i32 = arith.constant 0 : i32
    %c0_i32_0 = arith.constant 0 : i32
    %c0_i32_1 = arith.constant 0 : i32
    return %c0_i32, %c0_i32_0 : i32, i32
  }
  func.func @transform_2(%arg0: i32) -> (i32, i32) {
    %c0_i32 = arith.constant 0 : i32
    %c0_i32_0 = arith.constant 0 : i32
    %c0_i32_1 = arith.constant 0 : i32
    return %c0_i32, %c0_i32_0 : i32, i32
  }
  func.func @transform_3(%arg0: i32) -> (i32, i32) {
    %c0_i32 = arith.constant 0 : i32
    %c0_i32_0 = arith.constant 0 : i32
    return %c0_i32, %arg0 : i32, i32
  }
}

</mosaic_0001>

<llo_original>
// kernel: tpu_custom_call.1
$region0: #{tpu_custom_call.1}
  #allocation0 [shape = 'u32[]', space=smem, size = 0x4, offset = 0x4, fixed_abs, tag = 'smem constant byte address 0x4 - core index']
  #allocation1 [shape = 'u32[144,128]{1,0:T(1,128)}', space=vmem, size = 0x12000, scoped, tag = 'internal scratch']
  %s0 = inlined_call_operand.vmem [shape: f32[8,128], index: 0, kind: input, shape index: {}]
  %s1 = inlined_call_operand.vmem [shape: f32[8,1], index: 1, kind: input, shape index: {}]
  %s2 = inlined_call_operand.vmem [shape: f32[8,1], index: 2, kind: input, shape index: {}]
  %s3 = inlined_call_operand.hbm [shape: f32[8,128], index: 3, kind: output, shape index: {}]
  %s4 = sld [smem:[#allocation0]]
  $region26: #{tpu_custom_call.1} parent=0
    _
  %s6 = ssub.s32 1, %s4
  %s7 = scalar_select 0, %s6, %s4
  $region1: #{tpu_custom_call.1} parent=0
    #allocation2 [shape = 'u8[4096]{0}', space=vmem, size = 0x1000, scoped, tag = 'output window, operand 0, single buffered']
    #allocation3 [shape = 's32[1]{0}', space=sflag, size = 0x4, scoped, tag = 'scoped memory for tpu_custom_call.1']
    %8 = vsyncpa [#allocation3], 0
    // Predicated region
    $region2: #{tpu_custom_call.1} parent=1 // pred_check
      _
    $region3: #{tpu_custom_call.1} parent=1 // pred_check_branch
      %10 = sbr.rel (0) target = $region5
    $region4: #{tpu_custom_call.1} parent=1 // pred_region
      _
    $region5: #{tpu_custom_call.1} parent=1 // pred_fallthru
      _
    // Predicated region
    $region6: #{tpu_custom_call.1} parent=1 // pred_check
      _
    $region7: #{tpu_custom_call.1} parent=1 // pred_check_branch
      %12 = sbr.rel (0) target = $region9
    $region8: #{tpu_custom_call.1} parent=1 // pred_region
      _
    $region9: #{tpu_custom_call.1} parent=1 // pred_fallthru
      _
    // Predicated region
    $region10: #{tpu_custom_call.1} parent=1 // pred_check
      _
    $region11: #{tpu_custom_call.1} parent=1 // pred_check_branch
      %14 = sbr.rel (0) target = $region13
    $region12: #{tpu_custom_call.1} parent=1 // pred_region
      _
    $region13: #{tpu_custom_call.1} parent=1 // pred_fallthru
      _
    %v15 = vld [vmem:[%s0] sm:$0xff]
    %v16 = vld [vmem:[%s1] sm:$0xff]
    %v17 = vld [vmem:[%s2] sm:$0xff]
    %vm18 = vcmp.gt.f32.partialorder %v16, 0.5
    %v19 = vand.u32 2147483647, %v15
    %vm20 = vcmp.ge.f32.partialorder %v15, 0.0
    %22 = vset.pattern.permute.xlu0 0
    %23 = vperm.xlu0 %22, %v16
    %v24 = vpop.permute.xlu0 %23
    %v26 = vmul.f32 %v24, %v15
    %28 = vset.pattern.permute.xlu0 0
    %29 = vperm.xlu0 %28, %v17
    %v30 = vpop.permute.xlu0 %29
    %v32 = vmul.f32 %v30, %v15
    %v33 = vrot.slane %v26, 4
    %v34 = vadd.f32 %v26, %v33
    %v35 = vrot.slane %v34, 2
    %v36 = vadd.f32 %v34, %v35
    %v37 = vrot.slane %v36, 1
    %v38 = vadd.f32 %v36, %v37
    %v39 = vrot.slane %v32, 4
    %v40 = vadd.f32 %v32, %v39
    %v41 = vrot.slane %v40, 2
    %v42 = vadd.f32 %v40, %v41
    %v43 = vrot.slane %v42, 1
    %v44 = vadd.f32 %v42, %v43
    %v45 = vmul.f32 %v26, %v15
    %v46 = vrot.slane %v45, 4
    %v47 = vadd.f32 %v45, %v46
    %v48 = vrot.slane %v47, 2
    %v49 = vadd.f32 %v47, %v48
    %v50 = vrot.slane %v49, 1
    %v51 = vadd.f32 %v49, %v50
    %v52 = vrsqrt.pop %v51
    %v53 = vmul.f32 %v51, %v52
    %vm54 = vcmp.eq.f32.partialorder %v51, inf
    %v55 = vsel %vm54, %v51, %v53
    %vm56 = vcmp.eq.f32.partialorder %v51, 0.0
    %v57 = vand.u32 %v51, 2147483648
    %v58 = vsel %vm56, %v57, %v55
    %v59 = vmul.f32 %v32, %v15
    %v60 = vrot.slane %v59, 4
    %v61 = vadd.f32 %v59, %v60
    %v62 = vrot.slane %v61, 2
    %v63 = vadd.f32 %v61, %v62
    %v64 = vrot.slane %v63, 1
    %v65 = vadd.f32 %v63, %v64
    %v66 = vrsqrt.pop %v65
    %v67 = vmul.f32 %v65, %v66
    %vm68 = vcmp.eq.f32.partialorder %v65, inf
    %v69 = vsel %vm68, %v65, %v67
    %vm70 = vcmp.eq.f32.partialorder %v65, 0.0
    %v71 = vand.u32 %v65, 2147483648
    %v72 = vsel %vm70, %v71, %v69
    %vm73 = vcmask 7168
    %v74 = vsel %vm73, %v16, 0.0
    %v75 = vrot.slane %v74, 4
    %v76 = vadd.f32 %v74, %v75
    %v77 = vrot.slane %v76, 2
    %v78 = vadd.f32 %v76, %v77
    %v79 = vrot.slane %v78, 1
    %v80 = vadd.f32 %v78, %v79
    %v81 = vrsqrt.pop %v80
    %v82 = vmul.f32 %v80, %v81
    %vm83 = vcmp.eq.f32.partialorder %v80, inf
    %v84 = vsel %vm83, %v80, %v82
    %vm85 = vcmp.eq.f32.partialorder %v80, 0.0
    %v86 = vand.u32 %v80, 2147483648
    %v87 = vsel %vm85, %v86, %v84
    %v88 = vsel %vm73, %v17, 0.0
    %v89 = vrot.slane %v88, 4
    %v90 = vadd.f32 %v88, %v89
    %v91 = vrot.slane %v90, 2
    %v92 = vadd.f32 %v90, %v91
    %v93 = vrot.slane %v92, 1
    %v94 = vadd.f32 %v92, %v93
    %v95 = vrsqrt.pop %v94
    %v96 = vmul.f32 %v94, %v95
    %vm97 = vcmp.eq.f32.partialorder %v94, inf
    %v98 = vsel %vm97, %v94, %v96
    %vm99 = vcmp.eq.f32.partialorder %v94, 0.0
    %v100 = vand.u32 %v94, 2147483648
    %v101 = vsel %vm99, %v100, %v98
    %103 = vset.pattern.permute.xlu0 0
    %104 = vperm.xlu0 %103, %v87
    %v105 = vpop.permute.xlu0 %104
    %v107 = vmul.f32 %v105, %v58
    %109 = vset.pattern.permute.xlu0 0
    %110 = vperm.xlu0 %109, %v101
    %v111 = vpop.permute.xlu0 %110
    %v113 = vmul.f32 %v111, %v72
    %v114 = vmax.f32 %v107, 1e-30
    %v115 = vrcp.pop %v114
    %v116 = vmul.f32 %v38, %v115
    %v117 = vmax.f32 %v113, 1e-30
    %v118 = vrcp.pop %v117
    %v119 = vmul.f32 %v44, %v118
    %v120 = vmul.f32 %v116, 1.442695
    %v121 = vpow.pop %v120
    %v122 = vsub.f32 0.0, %v116
    %v123 = vmul.f32 %v122, 1.442695
    %v124 = vpow.pop %v123
    %v125 = vsel %vm20, %v121, %v124
    %v126 = vsub.f32 0.0, %v119
    %v127 = vsel %vm20, %v119, %v126
    %v128 = vsel %vm18, 1, 0
    %129 = vset.pattern.permute.xlu0 0
    %130 = vperm.xlu0 %129, %v128
    %v131 = vpop.permute.xlu0 %130
    %vm132 = vcmp.eq.s32.totalorder %v131, 1
    %v133 = vsel %vm132, %v125, %v127
    %134 = vst [vmem:[#allocation2] sm:$0xff] %v133
    %v135 = vsub.f32 1.0, %v16
    %v136 = vmul.f32 %v135, 1e+30
    %138 = vset.pattern.permute.xlu0 0
    %139 = vperm.xlu0 %138, %v136
    %v140 = vpop.permute.xlu0 %139
    %v142 = vadd.f32 %v19, %v140
    %v143 = vrot.slane %v142, 4
    %v144 = vmin.f32 %v142, %v143
    %v145 = vrot.slane %v144, 2
    %v146 = vmin.f32 %v144, %v145
    %v147 = vrot.slane %v146, 1
    %v148 = vmin.f32 %v146, %v147
    %v149 = vsub.f32 1.0, %v17
    %v150 = vmul.f32 %v149, 1e+30
    %152 = vset.pattern.permute.xlu0 0
    %153 = vperm.xlu0 %152, %v150
    %v154 = vpop.permute.xlu0 %153
    %v156 = vadd.f32 %v19, %v154
    %v157 = vrot.slane %v156, 4
    %v158 = vmin.f32 %v156, %v157
    %v159 = vrot.slane %v158, 2
    %v160 = vmin.f32 %v158, %v159
    %v161 = vrot.slane %v160, 1
    %v162 = vmin.f32 %v160, %v161
    %v163 = vmul.f32 %v148, %v107
    %164 = vmin.xlane.f32.xlu0 %v163
    %v165 = vpop.xlane.xlu0 %164
    %s166 = vtos %v165
    %p167 = scmp.lt.f32.partialorder %s166, 1e-08
    %v168 = vmul.f32 %v162, %v113
    %169 = vmin.xlane.f32.xlu0 %v168
    %v170 = vpop.xlane.xlu0 %169
    %s171 = vtos %v170
    %p172 = scmp.lt.f32.partialorder %s171, 1e-08
    %p173 = por %p167, %p172
    // Predicated region
    $region14: #{tpu_custom_call.1} parent=1 // pred_check
      %p174 = pneg %p173
    $region15: #{tpu_custom_call.1} parent=1 // pred_check_branch
      %176 = sbr.rel (%p174) target = $region17
    $region16: #{tpu_custom_call.1} parent=1 // pred_region
      %v177 = vmul.f32 %v19, %v107
      %v178 = vmul.f32 %v19, %v113
      %vm179 = vcmp.lt.f32.partialorder %v177, 1e-08
      %v180 = vmul.f32 %v15, %v38
      %v181 = vmul.f32 %v180, 1e+08
      %v182 = vsel %vm20, %v116, %v122
      %v183 = vsel %vm179, %v181, %v182
      %vm184 = vcmp.lt.f32.partialorder %v178, 1e-08
      %v185 = vmul.f32 %v15, %v44
      %v186 = vmul.f32 %v185, 1e+08
      %v187 = vsel %vm184, %v186, %v127
      %v188 = vmul.f32 %v183, 1.442695
      %v189 = vpow.pop %v188
      %v190 = vsel %vm132, %v189, %v187
      %191 = vst [vmem:[#allocation2] sm:$0xff] %v190
    $region17: #{tpu_custom_call.1} parent=1 // pred_fallthru
      _
    // Predicated region
    $region18: #{tpu_custom_call.1} parent=1 // pred_check
      _
    $region19: #{tpu_custom_call.1} parent=1 // pred_check_branch
      %193 = sbr.rel (0) target = $region21
    $region20: #{tpu_custom_call.1} parent=1 // pred_region
      %s195 = ssub.s32 128, 128
      %196 = vsyncadd [#allocation3], %s195
      %s198 = sshll.u32 [#allocation2], 4
      %s199 = int_to_ptr.vmem [resolvable:$true] %s198
      %201 = dma.vmem_to_hbm [thread:$0]  %s199, 128, %s3, [#allocation3]
    $region21: #{tpu_custom_call.1} parent=1 // pred_fallthru
      _
    // Predicated region
    $region22: #{tpu_custom_call.1} parent=1 // pred_check
      _
    $region23: #{tpu_custom_call.1} parent=1 // pred_check_branch
      %203 = sbr.rel (0) target = $region25
    $region24: #{tpu_custom_call.1} parent=1 // pred_region
      %204 = dma.done [#allocation3], 128
    $region25: #{tpu_custom_call.1} parent=1 // pred_fallthru
      _
    %205 = vsyncpa [#allocation3], 1

</llo_original>
